<compile_context>
chip_gen: v7x
topology: tpu7x:2x2x1
jax: 0.10.0
libtpu: 0.0.40
codegen_flags: <defaults>
</compile_context>

<pallas_src>
import functools

import jax
import jax.numpy as jnp
from jax.experimental import pallas as pl
from jax.experimental.pallas import tpu as pltpu

LANE = 128     # vreg lane width — pad feature dims to a multiple of this
SUBLANE = 8    # vreg sublane width — batch tile must be a multiple of this


def _round_up(x, m):
    return (x + m - 1) // m * m


def _pad2d(a, rows, cols):
    return jnp.pad(a, ((0, rows - a.shape[0]), (0, cols - a.shape[1])))


# ----------------------------- Pallas kernel --------------------------------
def _fused_mlp_kernel(x_ref, *refs, n_layers):
    """Whole-network body: chained matmul + bias (+ ReLU), all in VMEM/vregs."""
    out_ref = refs[-1]
    h = x_ref[...]
    for i in range(n_layers):
        w = refs[2 * i][...]
        b = refs[2 * i + 1][...]
        h = jnp.dot(h, w, preferred_element_type=jnp.float32) + b
        if i < n_layers - 1:          # hidden layers: ReLU; merged heads: none
            h = jnp.maximum(h, 0.0)
    out_ref[...] = h.astype(out_ref.dtype)


def fused_mlp_pallas(x, fused_layers, *, block_m=512):
    """Run the merged, lane-padded MLP in a single pallas_call tiled over batch."""
    m, k0 = x.shape
    n_layers = len(fused_layers)
    n_out = fused_layers[-1][0].shape[1]

    block_m = min(block_m, _round_up(m, SUBLANE))
    block_m = _round_up(block_m, SUBLANE)
    m_pad = _round_up(m, block_m)
    if m_pad != m:
        x = jnp.pad(x, ((0, m_pad - m), (0, 0)))

    kernel = functools.partial(_fused_mlp_kernel, n_layers=n_layers)

    in_specs = [pl.BlockSpec((block_m, k0), lambda i: (i, 0))]      # x batch tile
    args = [x]
    for w, b in fused_layers:
        in_specs.append(pl.BlockSpec(w.shape, lambda i: (0, 0)))    # full weight, VMEM-resident
        in_specs.append(pl.BlockSpec(b.shape, lambda i: (0, 0)))    # full bias
        args.extend([w, b])

    out = pl.pallas_call(
        kernel,
        out_shape=jax.ShapeDtypeStruct((m_pad, n_out), x.dtype),
        grid=(m_pad // block_m,),
        in_specs=in_specs,
        out_specs=pl.BlockSpec((block_m, n_out), lambda i: (i, 0)),
        compiler_params=pltpu.CompilerParams(
            dimension_semantics=("parallel",),
        ),
    )(*args)
    return out[:m]


# --------------------------- parameter handling ------------------------------
def init_linear_params(key, in_dim, out_dim, dtype=jnp.float32):
    """Matches torch.nn.Linear default init (U(-1/sqrt(in), 1/sqrt(in)))."""
    kw, kb = jax.random.split(key)
    bound = 1.0 / jnp.sqrt(jnp.asarray(in_dim, dtype))
    w = jax.random.uniform(kw, (in_dim, out_dim), dtype, -bound, bound)  # [in, out]
    b = jax.random.uniform(kb, (1, out_dim), dtype, -bound, bound)       # [1, out]
    return w, b


def init_multiclass_mlp_params(key, layers, n_classes):
    n_hidden = len(layers) - 1
    keys = jax.random.split(key, 2 * n_hidden + 2)
    kidx = 0
    params = {"state": [], "action": []}
    for branch in ("state", "action"):
        for i in range(n_hidden):
            params[branch].append(
                init_linear_params(keys[kidx], layers[i], layers[i + 1]))
            kidx += 1
    params["state_layer"] = init_linear_params(keys[kidx], layers[-1], 2 * n_classes)
    kidx += 1
    params["action_layer"] = init_linear_params(keys[kidx], layers[-1], 1 * n_classes)
    return params


def _block_diag(a, b):
    za = jnp.zeros((a.shape[0], b.shape[1]), a.dtype)
    zb = jnp.zeros((b.shape[0], a.shape[1]), b.dtype)
    return jnp.concatenate(
        [jnp.concatenate([a, za], axis=1), jnp.concatenate([zb, b], axis=1)], axis=0)


def prepare_fused_params(params, in_dim):
    """Merge the state/action branches into one block-diagonal layer chain and
    zero-pad every feature dimension up to a multiple of the 128 lane width."""
    state_h, action_h = params["state"], params["action"]
    fused = []
    if state_h:
        # first hidden layer shares the input -> concat along N
        ws0, bs0 = state_h[0]
        wa0, ba0 = action_h[0]
        fused.append((jnp.concatenate([ws0, wa0], axis=1),
                      jnp.concatenate([bs0, ba0], axis=1)))
        # remaining hidden layers consume [state_h || action_h] -> block-diagonal
        for (ws, bs), (wa, ba) in zip(state_h[1:], action_h[1:]):
            fused.append((_block_diag(ws, wa), jnp.concatenate([bs, ba], axis=1)))
        head_merge = _block_diag
    else:
        head_merge = lambda a, b: jnp.concatenate([a, b], axis=1)  # shared raw input

    wsh, bsh = params["state_layer"]
    wah, bah = params["action_layer"]
    fused.append((head_merge(wsh, wah), jnp.concatenate([bsh, bah], axis=1)))

    dims = [in_dim] + [w.shape[1] for w, _ in fused]
    pdims = [_round_up(d, LANE) for d in dims]
    padded = [(_pad2d(w, pdims[i], pdims[i + 1]), _pad2d(b, 1, pdims[i + 1]))
              for i, (w, b) in enumerate(fused)]
    return padded, pdims[0]


# ------------------------------ forward pass ---------------------------------
@functools.partial(jax.jit, static_argnames=("n_classes", "block_m"))
def multiclass_mlp_forward(params, inputs, n_classes, *, block_m=512):
    fused_layers, k0_pad = prepare_fused_params(params, inputs.shape[1])
    x = _pad2d(inputs, inputs.shape[0], k0_pad)
    out = fused_mlp_pallas(x, fused_layers, block_m=block_m)
    n_state = 2 * n_classes
    return {"state": out[:, :n_state],
            "action": out[:, n_state:n_state + n_classes]}


# ------------------------------- reference -----------------------------------
def multiclass_mlp_forward_ref(params, inputs):
    def lin(x, w, b):
        return x @ w + b

    x = inputs
    for w, b in params["state"]:
        x = jnp.maximum(lin(x, w, b), 0.0)
    state = lin(x, *params["state_layer"])
    x = inputs
    for w, b in params["action"]:
        x = jnp.maximum(lin(x, w, b), 0.0)
    action = lin(x, *params["action_layer"])
    return {"state": state, "action": action}


if __name__ == "__main__":
    layers = [16, 32, 32]   # MLP layer widths (input dim = 16)
    n_classes = 3
    batch = 8

    key = jax.random.PRNGKey(0)
    k_params, k_input = jax.random.split(key)
    params = init_multiclass_mlp_params(k_params, layers, n_classes)
    x = jax.random.normal(k_input, (batch, layers[0]), jnp.float32)

    out = multiclass_mlp_forward(params, x, n_classes)
    out = jax.tree_util.tree_map(jax.block_until_ready, out)

    ref = multiclass_mlp_forward_ref(params, x)
    assert out["state"].shape == (batch, 2 * n_classes)
    assert out["action"].shape == (batch, n_classes)
    assert jnp.allclose(out["state"], ref["state"], atol=1e-5, rtol=1e-5)
    assert jnp.allclose(out["action"], ref["action"], atol=1e-5, rtol=1e-5)

    print("KERNEL_OK")
</pallas_src>

<mosaic_0001>
module attributes {stable_mosaic.version = 11 : i64} {
  func.func @_fused_mlp_kernel(%arg0: i32, %arg1: memref<8x128xf32, #tpu.memory_space<vmem>>, %arg2: memref<128x128xf32, #tpu.memory_space<vmem>>, %arg3: memref<1x128xf32, #tpu.memory_space<vmem>>, %arg4: memref<128x128xf32, #tpu.memory_space<vmem>>, %arg5: memref<1x128xf32, #tpu.memory_space<vmem>>, %arg6: memref<128x128xf32, #tpu.memory_space<vmem>>, %arg7: memref<1x128xf32, #tpu.memory_space<vmem>>, %arg8: memref<8x128xf32, #tpu.memory_space<vmem>>) attributes {dimension_semantics = [#tpu.dimension_semantics<parallel>], iteration_bounds = array<i64: 1>, scalar_prefetch = 0 : i64, scratch_operands = 0 : i64, tpu.core_type = #tpu.core_type<tc>, window_params = [{transform_indices = @transform_0, window_bounds = array<i64: 8, 128>}, {pipeline_mode = #tpu.pipeline_mode<synchronous>, transform_indices = @transform_1, window_bounds = array<i64: 128, 128>}, {pipeline_mode = #tpu.pipeline_mode<synchronous>, transform_indices = @transform_2, window_bounds = array<i64: 1, 128>}, {pipeline_mode = #tpu.pipeline_mode<synchronous>, transform_indices = @transform_3, window_bounds = array<i64: 128, 128>}, {pipeline_mode = #tpu.pipeline_mode<synchronous>, transform_indices = @transform_4, window_bounds = array<i64: 1, 128>}, {pipeline_mode = #tpu.pipeline_mode<synchronous>, transform_indices = @transform_5, window_bounds = array<i64: 128, 128>}, {pipeline_mode = #tpu.pipeline_mode<synchronous>, transform_indices = @transform_6, window_bounds = array<i64: 1, 128>}, {transform_indices = @transform_7, window_bounds = array<i64: 8, 128>}]} {
    %c0 = arith.constant 0 : index
    %c0_0 = arith.constant 0 : index
    %0 = vector.load %arg1[%c0, %c0_0] : memref<8x128xf32, #tpu.memory_space<vmem>>, vector<8x128xf32>
    %c0_1 = arith.constant 0 : index
    %c0_2 = arith.constant 0 : index
    %1 = vector.load %arg2[%c0_1, %c0_2] : memref<128x128xf32, #tpu.memory_space<vmem>>, vector<128x128xf32>
    %c0_3 = arith.constant 0 : index
    %c0_4 = arith.constant 0 : index
    %2 = vector.load %arg3[%c0_3, %c0_4] : memref<1x128xf32, #tpu.memory_space<vmem>>, vector<1x128xf32>
    %cst = arith.constant dense<0.000000e+00> : vector<8x128xf32>
    %3 = tpu.matmul %0, %1, %cst {dimension_numbers = #tpu.dot_dimension_numbers<[1], [0], [0], [1], [0, 0, 1, 1], [], []>} : vector<8x128xf32>, vector<128x128xf32>, vector<8x128xf32> -> vector<8x128xf32>
    %4 = vector.broadcast %2 : vector<1x128xf32> to vector<8x128xf32>
    %5 = arith.addf %3, %4 : vector<8x128xf32>
    %cst_5 = arith.constant 0.000000e+00 : f32
    %6 = vector.broadcast %cst_5 : f32 to vector<8x128xf32>
    %7 = arith.maximumf %5, %6 : vector<8x128xf32>
    %c0_6 = arith.constant 0 : index
    %c0_7 = arith.constant 0 : index
    %8 = vector.load %arg4[%c0_6, %c0_7] : memref<128x128xf32, #tpu.memory_space<vmem>>, vector<128x128xf32>
    %c0_8 = arith.constant 0 : index
    %c0_9 = arith.constant 0 : index
    %9 = vector.load %arg5[%c0_8, %c0_9] : memref<1x128xf32, #tpu.memory_space<vmem>>, vector<1x128xf32>
    %cst_10 = arith.constant dense<0.000000e+00> : vector<8x128xf32>
    %10 = tpu.matmul %7, %8, %cst_10 {dimension_numbers = #tpu.dot_dimension_numbers<[1], [0], [0], [1], [0, 0, 1, 1], [], []>} : vector<8x128xf32>, vector<128x128xf32>, vector<8x128xf32> -> vector<8x128xf32>
    %11 = vector.broadcast %9 : vector<1x128xf32> to vector<8x128xf32>
    %12 = arith.addf %10, %11 : vector<8x128xf32>
    %cst_11 = arith.constant 0.000000e+00 : f32
    %13 = vector.broadcast %cst_11 : f32 to vector<8x128xf32>
    %14 = arith.maximumf %12, %13 : vector<8x128xf32>
    %c0_12 = arith.constant 0 : index
    %c0_13 = arith.constant 0 : index
    %15 = vector.load %arg6[%c0_12, %c0_13] : memref<128x128xf32, #tpu.memory_space<vmem>>, vector<128x128xf32>
    %c0_14 = arith.constant 0 : index
    %c0_15 = arith.constant 0 : index
    %16 = vector.load %arg7[%c0_14, %c0_15] : memref<1x128xf32, #tpu.memory_space<vmem>>, vector<1x128xf32>
    %cst_16 = arith.constant dense<0.000000e+00> : vector<8x128xf32>
    %17 = tpu.matmul %14, %15, %cst_16 {dimension_numbers = #tpu.dot_dimension_numbers<[1], [0], [0], [1], [0, 0, 1, 1], [], []>} : vector<8x128xf32>, vector<128x128xf32>, vector<8x128xf32> -> vector<8x128xf32>
    %18 = vector.broadcast %16 : vector<1x128xf32> to vector<8x128xf32>
    %19 = arith.addf %17, %18 : vector<8x128xf32>
    %c0_17 = arith.constant 0 : index
    %c0_18 = arith.constant 0 : index
    %20 = vector.load %arg8[%c0_17, %c0_18] : memref<8x128xf32, #tpu.memory_space<vmem>>, vector<8x128xf32>
    tpu.vector_store %arg8[%c0_17, %c0_18], %19 {strides = array<i32>} : memref<8x128xf32, #tpu.memory_space<vmem>>, vector<8x128xf32>,
    return
  }
  func.func @transform_0(%arg0: i32) -> (i32, i32) {
    %c0_i32 = arith.constant 0 : i32
    %c0_i32_0 = arith.constant 0 : i32
    return %arg0, %c0_i32 : i32, i32
  }
  func.func @transform_1(%arg0: i32) -> (i32, i32) {
    %c0_i32 = arith.constant 0 : i32
    %c0_i32_0 = arith.constant 0 : i32
    %c0_i32_1 = arith.constant 0 : i32
    return %c0_i32, %c0_i32_0 : i32, i32
  }
  func.func @transform_2(%arg0: i32) -> (i32, i32) {
    %c0_i32 = arith.constant 0 : i32
    %c0_i32_0 = arith.constant 0 : i32
    %c0_i32_1 = arith.constant 0 : i32
    return %c0_i32, %c0_i32_0 : i32, i32
  }
  func.func @transform_3(%arg0: i32) -> (i32, i32) {
    %c0_i32 = arith.constant 0 : i32
    %c0_i32_0 = arith.constant 0 : i32
    %c0_i32_1 = arith.constant 0 : i32
    return %c0_i32, %c0_i32_0 : i32, i32
  }
  func.func @transform_4(%arg0: i32) -> (i32, i32) {
    %c0_i32 = arith.constant 0 : i32
    %c0_i32_0 = arith.constant 0 : i32
    %c0_i32_1 = arith.constant 0 : i32
    return %c0_i32, %c0_i32_0 : i32, i32
  }
  func.func @transform_5(%arg0: i32) -> (i32, i32) {
    %c0_i32 = arith.constant 0 : i32
    %c0_i32_0 = arith.constant 0 : i32
    %c0_i32_1 = arith.constant 0 : i32
    return %c0_i32, %c0_i32_0 : i32, i32
  }
  func.func @transform_6(%arg0: i32) -> (i32, i32) {
    %c0_i32 = arith.constant 0 : i32
    %c0_i32_0 = arith.constant 0 : i32
    %c0_i32_1 = arith.constant 0 : i32
    return %c0_i32, %c0_i32_0 : i32, i32
  }
  func.func @transform_7(%arg0: i32) -> (i32, i32) {
    %c0_i32 = arith.constant 0 : i32
    %c0_i32_0 = arith.constant 0 : i32
    return %arg0, %c0_i32 : i32, i32
  }
}

</mosaic_0001>

<llo_original>
// kernel: multiclass_mlp_forward.1
$region0: #{multiclass_mlp_forward.1}
  #allocation0 [shape = 'u32[]', space=smem, size = 0x4, offset = 0x4, fixed_abs, tag = 'smem constant byte address 0x4 - core index']
  #allocation1 [shape = 'u32[144,128]{1,0:T(1,128)}', space=vmem, size = 0x12000, scoped, tag = 'internal scratch']
  %s0 = inlined_call_operand.vmem [shape: f32[8,128], index: 0, kind: input, shape index: {}]
  %s1 = inlined_call_operand.vmem [shape: f32[128,128], index: 1, kind: input, shape index: {}]
  %s2 = inlined_call_operand.vmem [shape: f32[1,128], index: 2, kind: input, shape index: {}]
  %s3 = inlined_call_operand.vmem [shape: f32[128,128], index: 3, kind: input, shape index: {}]
  %s4 = inlined_call_operand.vmem [shape: f32[1,128], index: 4, kind: input, shape index: {}]
  %s5 = inlined_call_operand.vmem [shape: f32[128,128], index: 5, kind: input, shape index: {}]
  %s6 = inlined_call_operand.vmem [shape: f32[1,128], index: 6, kind: input, shape index: {}]
  %s7 = inlined_call_operand.vmem [shape: f32[8,128], index: 7, kind: output, shape index: {}]
  %s8 = sld [smem:[#allocation0]]
  $region38: #{multiclass_mlp_forward.1} parent=0
    _
  %s10 = ssub.s32 1, %s8
  %s11 = scalar_select 0, %s10, %s8
  // Predicated region
  $region2: #{multiclass_mlp_forward.1} parent=0 // pred_check
    _
  $region3: #{multiclass_mlp_forward.1} parent=0 // pred_check_branch
    %13 = sbr.rel (0) target = $region5
  $region4: #{multiclass_mlp_forward.1} parent=0 // pred_region
    _
  $region5: #{multiclass_mlp_forward.1} parent=0 // pred_fallthru
    _
  // Predicated region
  $region6: #{multiclass_mlp_forward.1} parent=0 // pred_check
    _
  $region7: #{multiclass_mlp_forward.1} parent=0 // pred_check_branch
    %15 = sbr.rel (0) target = $region9
  $region8: #{multiclass_mlp_forward.1} parent=0 // pred_region
    _
  $region9: #{multiclass_mlp_forward.1} parent=0 // pred_fallthru
    _
  // Predicated region
  $region10: #{multiclass_mlp_forward.1} parent=0 // pred_check
    _
  $region11: #{multiclass_mlp_forward.1} parent=0 // pred_check_branch
    %17 = sbr.rel (0) target = $region13
  $region12: #{multiclass_mlp_forward.1} parent=0 // pred_region
    _
  $region13: #{multiclass_mlp_forward.1} parent=0 // pred_fallthru
    _
  // Predicated region
  $region14: #{multiclass_mlp_forward.1} parent=0 // pred_check
    _
  $region15: #{multiclass_mlp_forward.1} parent=0 // pred_check_branch
    %19 = sbr.rel (0) target = $region17
  $region16: #{multiclass_mlp_forward.1} parent=0 // pred_region
    _
  $region17: #{multiclass_mlp_forward.1} parent=0 // pred_fallthru
    _
  // Predicated region
  $region18: #{multiclass_mlp_forward.1} parent=0 // pred_check
    _
  $region19: #{multiclass_mlp_forward.1} parent=0 // pred_check_branch
    %21 = sbr.rel (0) target = $region21
  $region20: #{multiclass_mlp_forward.1} parent=0 // pred_region
    _
  $region21: #{multiclass_mlp_forward.1} parent=0 // pred_fallthru
    _
  // Predicated region
  $region22: #{multiclass_mlp_forward.1} parent=0 // pred_check
    _
  $region23: #{multiclass_mlp_forward.1} parent=0 // pred_check_branch
    %23 = sbr.rel (0) target = $region25
  $region24: #{multiclass_mlp_forward.1} parent=0 // pred_region
    _
  $region25: #{multiclass_mlp_forward.1} parent=0 // pred_fallthru
    _
  // Predicated region
  $region26: #{multiclass_mlp_forward.1} parent=0 // pred_check
    _
  $region27: #{multiclass_mlp_forward.1} parent=0 // pred_check_branch
    %25 = sbr.rel (0) target = $region29
  $region28: #{multiclass_mlp_forward.1} parent=0 // pred_region
    _
  $region29: #{multiclass_mlp_forward.1} parent=0 // pred_fallthru
    _
  %v26 = vld [vmem:[%s0] sm:$0xff]
  %v27 = vld [vmem:[%s1] sm:$0xff]
  %v28 = vld [vmem:[%s1 + $0x8] sm:$0xff]
  %v29 = vld [vmem:[%s1 + $0x10] sm:$0xff]
  %v30 = vld [vmem:[%s1 + $0x18] sm:$0xff]
  %v31 = vld [vmem:[%s1 + $0x20] sm:$0xff]
  %v32 = vld [vmem:[%s1 + $0x28] sm:$0xff]
  %v33 = vld [vmem:[%s1 + $0x30] sm:$0xff]
  %v34 = vld [vmem:[%s1 + $0x38] sm:$0xff]
  %v35 = vld [vmem:[%s1 + $0x40] sm:$0xff]
  %v36 = vld [vmem:[%s1 + $0x48] sm:$0xff]
  %v37 = vld [vmem:[%s1 + $0x50] sm:$0xff]
  %v38 = vld [vmem:[%s1 + $0x58] sm:$0xff]
  %v39 = vld [vmem:[%s1 + $0x60] sm:$0xff]
  %v40 = vld [vmem:[%s1 + $0x68] sm:$0xff]
  %v41 = vld [vmem:[%s1 + $0x70] sm:$0xff]
  %v42 = vld [vmem:[%s1 + $0x78] sm:$0xff]
  %v43 = vld [vmem:[%s2] sm:$0x1]
  %v45 = vlaneseq
  %v46 = vshrl.u32 %v45, 7
  %v47 = vsub.s32 0, %v46
  %v48 = vrot.slane %v43, %v47
  %50 = vmatprep.subr.mxu0 0.0
  %51 = vmatpush1.msra.mxu0 %v27
  %52 = vmatprep.subr.mxu0 0.0
  %53 = vmatpush1.msra.mxu0 %v28
  %54 = vmatprep.subr.mxu0 0.0
  %55 = vmatpush1.msra.mxu0 %v29
  %56 = vmatprep.subr.mxu0 0.0
  %57 = vmatpush1.msra.mxu0 %v30
  %58 = vmatprep.subr.mxu0 0.0
  %59 = vmatpush1.msra.mxu0 %v31
  %60 = vmatprep.subr.mxu0 0.0
  %61 = vmatpush1.msra.mxu0 %v32
  %62 = vmatprep.subr.mxu0 0.0
  %63 = vmatpush1.msra.mxu0 %v33
  %64 = vmatprep.subr.mxu0 0.0
  %65 = vmatpush1.msra.mxu0 %v34
  %66 = vmatprep.subr.mxu0 0.0
  %67 = vmatpush1.msra.mxu0 %v35
  %68 = vmatprep.subr.mxu0 0.0
  %69 = vmatpush1.msra.mxu0 %v36
  %70 = vmatprep.subr.mxu0 0.0
  %71 = vmatpush1.msra.mxu0 %v37
  %72 = vmatprep.subr.mxu0 0.0
  %73 = vmatpush1.msra.mxu0 %v38
  %74 = vmatprep.subr.mxu0 0.0
  %75 = vmatpush1.msra.mxu0 %v39
  %76 = vmatprep.subr.mxu0 0.0
  %77 = vmatpush1.msra.mxu0 %v40
  %78 = vmatprep.subr.mxu0 0.0
  %79 = vmatpush1.msra.mxu0 %v41
  %80 = vmatprep.subr.mxu0 0.0
  %81 = vmatpush1.msra.mxu0 %v42
  %82 = vmatprep.subr.mxu0 0.0
  %83 = vmatpush1.msra.mxu0 0.0
  %84 = vmatprep.subr.mxu0 0.0
  %85 = vmatpush1.msra.mxu0 0.0
  %86 = vmatprep.subr.mxu0 0.0
  %87 = vmatpush1.msra.mxu0 0.0
  %88 = vmatprep.subr.mxu0 0.0
  %89 = vmatpush1.msra.mxu0 0.0
  %90 = vmatprep.subr.mxu0 0.0
  %91 = vmatpush1.msra.mxu0 0.0
  %92 = vmatprep.subr.mxu0 0.0
  %93 = vmatpush1.msra.mxu0 0.0
  %94 = vmatprep.subr.mxu0 0.0
  %95 = vmatpush1.msra.mxu0 0.0
  %96 = vmatprep.subr.mxu0 0.0
  %97 = vmatpush1.msra.mxu0 0.0
  %98 = vmatprep.subr.mxu0 0.0
  %99 = vmatpush1.msra.mxu0 0.0
  %100 = vmatprep.subr.mxu0 0.0
  %101 = vmatpush1.msra.mxu0 0.0
  %102 = vmatprep.subr.mxu0 0.0
  %103 = vmatpush1.msra.mxu0 0.0
  %104 = vmatprep.subr.mxu0 0.0
  %105 = vmatpush1.msra.mxu0 0.0
  %106 = vmatprep.subr.mxu0 0.0
  %107 = vmatpush1.msra.mxu0 0.0
  %108 = vmatprep.subr.mxu0 0.0
  %109 = vmatpush1.msra.mxu0 0.0
  %110 = vmatprep.subr.mxu0 0.0
  %111 = vmatpush1.msra.mxu0 0.0
  %112 = vmatprep.subr.mxu0 0.0
  %113 = vmatpush1.msra.mxu0 0.0
  %114 = vmatprep.mubr.f32.mxu0 0.0
  %115 = vmatmul.mubr.f32.gmra.mrb[0].mxu0 %v26
  %v116 = vpop.f32.mrb[0].mxu0
  %v117 = vadd.f32 %v48, %v116
  %v118 = vpop.f32.mrb[0].mxu0
  %119 = vdwg.mxu0
  %v120 = vmax.f32 %v117, 0.0
  %v121 = vld [vmem:[%s3] sm:$0xff]
  %v122 = vld [vmem:[%s3 + $0x8] sm:$0xff]
  %v123 = vld [vmem:[%s3 + $0x10] sm:$0xff]
  %v124 = vld [vmem:[%s3 + $0x18] sm:$0xff]
  %v125 = vld [vmem:[%s3 + $0x20] sm:$0xff]
  %v126 = vld [vmem:[%s3 + $0x28] sm:$0xff]
  %v127 = vld [vmem:[%s3 + $0x30] sm:$0xff]
  %v128 = vld [vmem:[%s3 + $0x38] sm:$0xff]
  %v129 = vld [vmem:[%s3 + $0x40] sm:$0xff]
  %v130 = vld [vmem:[%s3 + $0x48] sm:$0xff]
  %v131 = vld [vmem:[%s3 + $0x50] sm:$0xff]
  %v132 = vld [vmem:[%s3 + $0x58] sm:$0xff]
  %v133 = vld [vmem:[%s3 + $0x60] sm:$0xff]
  %v134 = vld [vmem:[%s3 + $0x68] sm:$0xff]
  %v135 = vld [vmem:[%s3 + $0x70] sm:$0xff]
  %v136 = vld [vmem:[%s3 + $0x78] sm:$0xff]
  %v137 = vld [vmem:[%s4] sm:$0x1]
  %v139 = vlaneseq
  %v140 = vshrl.u32 %v139, 7
  %v141 = vsub.s32 0, %v140
  %v142 = vrot.slane %v137, %v141
  %144 = vmatprep.subr.mxu0 0.0
  %145 = vmatpush1.msra.mxu0 %v121
  %146 = vmatprep.subr.mxu0 0.0
  %147 = vmatpush1.msra.mxu0 %v122
  %148 = vmatprep.subr.mxu0 0.0
  %149 = vmatpush1.msra.mxu0 %v123
  %150 = vmatprep.subr.mxu0 0.0
  %151 = vmatpush1.msra.mxu0 %v124
  %152 = vmatprep.subr.mxu0 0.0
  %153 = vmatpush1.msra.mxu0 %v125
  %154 = vmatprep.subr.mxu0 0.0
  %155 = vmatpush1.msra.mxu0 %v126
  %156 = vmatprep.subr.mxu0 0.0
  %157 = vmatpush1.msra.mxu0 %v127
  %158 = vmatprep.subr.mxu0 0.0
  %159 = vmatpush1.msra.mxu0 %v128
  %160 = vmatprep.subr.mxu0 0.0
  %161 = vmatpush1.msra.mxu0 %v129
  %162 = vmatprep.subr.mxu0 0.0
  %163 = vmatpush1.msra.mxu0 %v130
  %164 = vmatprep.subr.mxu0 0.0
  %165 = vmatpush1.msra.mxu0 %v131
  %166 = vmatprep.subr.mxu0 0.0
  %167 = vmatpush1.msra.mxu0 %v132
  %168 = vmatprep.subr.mxu0 0.0
  %169 = vmatpush1.msra.mxu0 %v133
  %170 = vmatprep.subr.mxu0 0.0
  %171 = vmatpush1.msra.mxu0 %v134
  %172 = vmatprep.subr.mxu0 0.0
  %173 = vmatpush1.msra.mxu0 %v135
  %174 = vmatprep.subr.mxu0 0.0
  %175 = vmatpush1.msra.mxu0 %v136
  %176 = vmatprep.subr.mxu0 0.0
  %177 = vmatpush1.msra.mxu0 0.0
  %178 = vmatprep.subr.mxu0 0.0
  %179 = vmatpush1.msra.mxu0 0.0
  %180 = vmatprep.subr.mxu0 0.0
  %181 = vmatpush1.msra.mxu0 0.0
  %182 = vmatprep.subr.mxu0 0.0
  %183 = vmatpush1.msra.mxu0 0.0
  %184 = vmatprep.subr.mxu0 0.0
  %185 = vmatpush1.msra.mxu0 0.0
  %186 = vmatprep.subr.mxu0 0.0
  %187 = vmatpush1.msra.mxu0 0.0
  %188 = vmatprep.subr.mxu0 0.0
  %189 = vmatpush1.msra.mxu0 0.0
  %190 = vmatprep.subr.mxu0 0.0
  %191 = vmatpush1.msra.mxu0 0.0
  %192 = vmatprep.subr.mxu0 0.0
  %193 = vmatpush1.msra.mxu0 0.0
  %194 = vmatprep.subr.mxu0 0.0
  %195 = vmatpush1.msra.mxu0 0.0
  %196 = vmatprep.subr.mxu0 0.0
  %197 = vmatpush1.msra.mxu0 0.0
  %198 = vmatprep.subr.mxu0 0.0
  %199 = vmatpush1.msra.mxu0 0.0
  %200 = vmatprep.subr.mxu0 0.0
  %201 = vmatpush1.msra.mxu0 0.0
  %202 = vmatprep.subr.mxu0 0.0
  %203 = vmatpush1.msra.mxu0 0.0
  %204 = vmatprep.subr.mxu0 0.0
  %205 = vmatpush1.msra.mxu0 0.0
  %206 = vmatprep.subr.mxu0 0.0
  %207 = vmatpush1.msra.mxu0 0.0
  %208 = vmatprep.mubr.f32.mxu0 0.0
  %209 = vmatmul.mubr.f32.gmra.mrb[0].mxu0 %v120
  %v210 = vpop.f32.mrb[0].mxu0
  %v211 = vadd.f32 %v142, %v210
  %v212 = vpop.f32.mrb[0].mxu0
  %213 = vdwg.mxu0
  %v214 = vmax.f32 %v211, 0.0
  %v215 = vld [vmem:[%s5] sm:$0xff]
  %v216 = vld [vmem:[%s5 + $0x8] sm:$0xff]
  %v217 = vld [vmem:[%s5 + $0x10] sm:$0xff]
  %v218 = vld [vmem:[%s5 + $0x18] sm:$0xff]
  %v219 = vld [vmem:[%s5 + $0x20] sm:$0xff]
  %v220 = vld [vmem:[%s5 + $0x28] sm:$0xff]
  %v221 = vld [vmem:[%s5 + $0x30] sm:$0xff]
  %v222 = vld [vmem:[%s5 + $0x38] sm:$0xff]
  %v223 = vld [vmem:[%s5 + $0x40] sm:$0xff]
  %v224 = vld [vmem:[%s5 + $0x48] sm:$0xff]
  %v225 = vld [vmem:[%s5 + $0x50] sm:$0xff]
  %v226 = vld [vmem:[%s5 + $0x58] sm:$0xff]
  %v227 = vld [vmem:[%s5 + $0x60] sm:$0xff]
  %v228 = vld [vmem:[%s5 + $0x68] sm:$0xff]
  %v229 = vld [vmem:[%s5 + $0x70] sm:$0xff]
  %v230 = vld [vmem:[%s5 + $0x78] sm:$0xff]
  %v231 = vld [vmem:[%s6] sm:$0x1]
  %v233 = vlaneseq
  %v234 = vshrl.u32 %v233, 7
  %v235 = vsub.s32 0, %v234
  %v236 = vrot.slane %v231, %v235
  %238 = vmatprep.subr.mxu0 0.0
  %239 = vmatpush1.msra.mxu0 %v215
  %240 = vmatprep.subr.mxu0 0.0
  %241 = vmatpush1.msra.mxu0 %v216
  %242 = vmatprep.subr.mxu0 0.0
  %243 = vmatpush1.msra.mxu0 %v217
  %244 = vmatprep.subr.mxu0 0.0
  %245 = vmatpush1.msra.mxu0 %v218
  %246 = vmatprep.subr.mxu0 0.0
  %247 = vmatpush1.msra.mxu0 %v219
  %248 = vmatprep.subr.mxu0 0.0
  %249 = vmatpush1.msra.mxu0 %v220
  %250 = vmatprep.subr.mxu0 0.0
  %251 = vmatpush1.msra.mxu0 %v221
  %252 = vmatprep.subr.mxu0 0.0
  %253 = vmatpush1.msra.mxu0 %v222
  %254 = vmatprep.subr.mxu0 0.0
  %255 = vmatpush1.msra.mxu0 %v223
  %256 = vmatprep.subr.mxu0 0.0
  %257 = vmatpush1.msra.mxu0 %v224
  %258 = vmatprep.subr.mxu0 0.0
  %259 = vmatpush1.msra.mxu0 %v225
  %260 = vmatprep.subr.mxu0 0.0
  %261 = vmatpush1.msra.mxu0 %v226
  %262 = vmatprep.subr.mxu0 0.0
  %263 = vmatpush1.msra.mxu0 %v227
  %264 = vmatprep.subr.mxu0 0.0
  %265 = vmatpush1.msra.mxu0 %v228
  %266 = vmatprep.subr.mxu0 0.0
  %267 = vmatpush1.msra.mxu0 %v229
  %268 = vmatprep.subr.mxu0 0.0
  %269 = vmatpush1.msra.mxu0 %v230
  %270 = vmatprep.subr.mxu0 0.0
  %271 = vmatpush1.msra.mxu0 0.0
  %272 = vmatprep.subr.mxu0 0.0
  %273 = vmatpush1.msra.mxu0 0.0
  %274 = vmatprep.subr.mxu0 0.0
  %275 = vmatpush1.msra.mxu0 0.0
  %276 = vmatprep.subr.mxu0 0.0
  %277 = vmatpush1.msra.mxu0 0.0
  %278 = vmatprep.subr.mxu0 0.0
  %279 = vmatpush1.msra.mxu0 0.0
  %280 = vmatprep.subr.mxu0 0.0
  %281 = vmatpush1.msra.mxu0 0.0
  %282 = vmatprep.subr.mxu0 0.0
  %283 = vmatpush1.msra.mxu0 0.0
  %284 = vmatprep.subr.mxu0 0.0
  %285 = vmatpush1.msra.mxu0 0.0
  %286 = vmatprep.subr.mxu0 0.0
  %287 = vmatpush1.msra.mxu0 0.0
  %288 = vmatprep.subr.mxu0 0.0
  %289 = vmatpush1.msra.mxu0 0.0
  %290 = vmatprep.subr.mxu0 0.0
  %291 = vmatpush1.msra.mxu0 0.0
  %292 = vmatprep.subr.mxu0 0.0
  %293 = vmatpush1.msra.mxu0 0.0
  %294 = vmatprep.subr.mxu0 0.0
  %295 = vmatpush1.msra.mxu0 0.0
  %296 = vmatprep.subr.mxu0 0.0
  %297 = vmatpush1.msra.mxu0 0.0
  %298 = vmatprep.subr.mxu0 0.0
  %299 = vmatpush1.msra.mxu0 0.0
  %300 = vmatprep.subr.mxu0 0.0
  %301 = vmatpush1.msra.mxu0 0.0
  %302 = vmatprep.mubr.f32.mxu0 0.0
  %303 = vmatmul.mubr.f32.gmra.mrb[0].mxu0 %v214
  %v304 = vpop.f32.mrb[0].mxu0
  %v305 = vadd.f32 %v236, %v304
  %v306 = vpop.f32.mrb[0].mxu0
  %307 = vdwg.mxu0
  %308 = vst [vmem:[%s7] sm:$0xff] %v305
  // Predicated region
  $region30: #{multiclass_mlp_forward.1} parent=0 // pred_check
    _
  $region31: #{multiclass_mlp_forward.1} parent=0 // pred_check_branch
    %310 = sbr.rel (0) target = $region33
  $region32: #{multiclass_mlp_forward.1} parent=0 // pred_region
    _
  $region33: #{multiclass_mlp_forward.1} parent=0 // pred_fallthru
    _
  // Predicated region
  $region34: #{multiclass_mlp_forward.1} parent=0 // pred_check
    _
  $region35: #{multiclass_mlp_forward.1} parent=0 // pred_check_branch
    %312 = sbr.rel (0) target = $region37
  $region36: #{multiclass_mlp_forward.1} parent=0 // pred_region
    _
  $region37: #{multiclass_mlp_forward.1} parent=0 // pred_fallthru
    _

</llo_original>
